<compile_context>
chip_gen: v6e
topology: v6e:2x2x1
jax: 0.10.0
libtpu: 0.0.40
codegen_flags: <defaults>
</compile_context>

<pallas_src>
import functools

import jax
import jax.numpy as jnp
from jax.experimental import pallas as pl
from jax.experimental.pallas import tpu as pltpu


# ----------------------------- Pallas kernel --------------------------------

def bottleneck_kernel(x_ref, w1_ref, b1_ref, w2_ref, b2_ref, mask_ref, o_ref,
                      *, shifts, add):
    """Fused cv1(1x1)+BN+SiLU -> cv2(3x3,p=1)+BN+SiLU -> (+x) for one lane block.

    x_ref   : (C1, L)       f32; channels on sublanes, flat (batch,spatial) on lanes
    w1_ref  : (C_p, C1)     cv1 weight (BN1 folded, padded channels), MXU dtype
    b1_ref  : (C_p, 1)      folded BN1 bias, f32
    w2_ref  : (C2, 9*C_p)   cv2 weight, tap-major columns (k*C_p + c), BN2 folded
    b2_ref  : (C2, 1)       folded BN2 bias, f32
    mask_ref: (9, L)        f32 {0,1} spatial-validity mask per tap
    o_ref   : (C2, L)       f32
    """
    x = x_ref[...]                                        # (C1, L) f32
    L = x.shape[1]

    # cv1: 1x1 conv (+ folded BN) + SiLU. bf16/f32 operands, f32 accumulation.
    y = jnp.dot(w1_ref[...], x.astype(w1_ref.dtype),
                preferred_element_type=jnp.float32)       # (C_p, L)
    y = y + b1_ref[...]
    y = y * jax.nn.sigmoid(y)                             # SiLU (EUP), f32

    # cv2: 3x3 conv, stride 1, pad 1 == ONE merged matmul over 9 lane-rolled,
    # mask-zeroed taps (no im2col in HBM, no per-tap matmul pushes).
    mask = mask_ref[...]                                  # (9, L) f32
    taps = []
    for k, s in enumerate(shifts):                        # static 9-tap unroll
        shifted = y if s == 0 else pltpu.roll(y, shift=(-s) % L, axis=1)
        taps.append(shifted * mask[k:k + 1, :])           # zero out-of-image lanes
    patches = jnp.concatenate(taps, axis=0)               # (9*C_p, L) f32, tile-aligned
    # TODO(synk): at production channel/spatial sizes hold this accumulator in a
    # VMEM scratch with an "arbitrary" reduction grid axis instead of vregs.
    z = jnp.dot(w2_ref[...], patches.astype(w2_ref.dtype),
                preferred_element_type=jnp.float32)       # (C2, L)
    z = z + b2_ref[...]                                   # folded BN2
    z = z * jax.nn.sigmoid(z)                             # SiLU, f32
    if add:                                               # residual shortcut
        z = z + x
    o_ref[...] = z.astype(o_ref.dtype)                    # lane-dense store


# ------------------------------ JAX wrapper ----------------------------------

def _auto_lane_blocks(batch):
    """2 lane blocks on multi-TensorCore chips (v4/v5p megacore, v7x), else 1."""
    try:
        kind = jax.devices()[0].device_kind.lower()
    except Exception:
        kind = ""
    multi_tc = any(tag in kind for tag in ("v4", "v5p", "v7", "7x"))
    return 2 if (multi_tc and batch >= 2) else 1


@functools.partial(jax.jit,
                   static_argnames=("shortcut", "mxu_dtype", "lane_blocks"))
def _bottleneck_forward(x_nchw, w1, bn1, w2, bn2, eps, *,
                        shortcut, mxu_dtype, lane_blocks):
    N, C1, H, W = x_nchw.shape
    C2, C_, _, _ = w2.shape
    HW = H * W
    L = N * HW
    add = shortcut and (C1 == C2)
    mdt = jnp.bfloat16 if mxu_dtype == "bfloat16" else jnp.float32

    G = lane_blocks
    NB = N // G                      # whole images per grid step
    Lb = NB * HW                     # lanes per grid step (multiple of 128 here)

    # Pad cv1 output channels to a multiple of 8 (f32 sublane tile) so the 9-tap
    # sublane concat in the kernel is tile-aligned. Padded rows are exact zeros
    # (zero weight + zero bias -> SiLU(0)=0) and hit zero w2 columns.
    C_p = -(-C_ // 8) * 8

    # channels -> sublanes, flattened (batch, spatial) -> lanes (lane-dense).
    # TODO(synk): pad H*W to a multiple of 128 here if generalizing to spatial
    # sizes where HW % 128 != 0, so output stores stay unmasked vst.
    x2d = jnp.transpose(x_nchw, (1, 0, 2, 3)).reshape(C1, L).astype(jnp.float32)

    # Fold inference-mode BatchNorm into the conv weights / biases.
    g1, be1, m1, v1 = bn1
    s1 = g1 / jnp.sqrt(v1 + eps)
    w1f = jnp.pad(w1[:, :, 0, 0] * s1[:, None],
                  ((0, C_p - C_), (0, 0))).astype(mdt)             # (C_p, C1)
    b1f = jnp.pad((be1 - m1 * s1)[:, None],
                  ((0, C_p - C_), (0, 0))).astype(jnp.float32)     # (C_p, 1)

    g2, be2, m2, v2 = bn2
    s2 = g2 / jnp.sqrt(v2 + eps)
    # (O, I, 3, 3) -> (O, KH, KW, I) -> pad I -> (C2, 9*C_p); column = k*C_p + c.
    w2r = jnp.transpose(w2, (0, 2, 3, 1))                          # (C2, 3, 3, C_)
    w2r = jnp.pad(w2r, ((0, 0), (0, 0), (0, 0), (0, C_p - C_)))
    w2f = (w2r.reshape(C2, 9 * C_p) * s2[:, None]).astype(mdt)     # (C2, 9*C_p)
    b2f = (be2 - m2 * s2)[:, None].astype(jnp.float32)             # (C2, 1)

    # Per-tap spatial validity masks, hoisted out of the kernel (no int div on
    # the VPU, no per-iteration compare/AND chains).
    p = jnp.arange(HW, dtype=jnp.int32)
    i, j = p // W, p % W
    shifts, rows = [], []
    for k in range(9):
        di, dj = k // 3 - 1, k % 3 - 1
        shifts.append(di * W + dj)
        rows.append((i + di >= 0) & (i + di < H) & (j + dj >= 0) & (j + dj < W))
    mask_img = jnp.stack(rows).astype(jnp.float32)                 # (9, HW)
    mask_blk = jnp.tile(mask_img, (1, NB))                         # (9, Lb)

    kernel = functools.partial(bottleneck_kernel, shifts=tuple(shifts), add=add)
    out2d = pl.pallas_call(
        kernel,
        out_shape=jax.ShapeDtypeStruct((C2, L), jnp.float32),
        grid=(G,),
        in_specs=[
            pl.BlockSpec((C1, Lb), lambda g: (0, g)),        # x (f32, residual)
            pl.BlockSpec((C_p, C1), lambda g: (0, 0)),       # folded cv1 weight
            pl.BlockSpec((C_p, 1), lambda g: (0, 0)),        # folded BN1 bias
            pl.BlockSpec((C2, 9 * C_p), lambda g: (0, 0)),   # folded cv2 weight
            pl.BlockSpec((C2, 1), lambda g: (0, 0)),         # folded BN2 bias
            pl.BlockSpec((9, Lb), lambda g: (0, 0)),         # boundary masks
        ],
        out_specs=pl.BlockSpec((C2, Lb), lambda g: (0, g)),
        # Reuse the residual input buffer as the output when it matches.
        input_output_aliases=({0: 0} if add else {}),
        # At production sizes, re-derive tile sizes against 64 MiB VMEM on v7x
        # and set vmem_limit_bytes here explicitly; not needed at these shapes.
        compiler_params=pltpu.CompilerParams(
            dimension_semantics=("parallel",)),
    )(x2d, w1f, b1f, w2f, b2f, mask_blk)

    return jnp.transpose(out2d.reshape(C2, N, H, W), (1, 0, 2, 3))


def bottleneck_forward(x_nchw, w1, bn1, w2, bn2, *, shortcut=True, eps=1e-3,
                       mxu_dtype="bfloat16", lane_blocks=None):
    """x_nchw: (N,C1,H,W); w1: (C_,C1,1,1); w2: (C2,C_,3,3); bn* = (gamma,beta,mean,var).

    eps=1e-3 matches nn.BatchNorm2d(..., eps=0.001) in the Conv block.
    """
    N = x_nchw.shape[0]
    if lane_blocks is None:
        lane_blocks = _auto_lane_blocks(N)
    if N % lane_blocks != 0:
        lane_blocks = 1
    return _bottleneck_forward(x_nchw, w1, bn1, w2, bn2, eps,
                               shortcut=shortcut, mxu_dtype=mxu_dtype,
                               lane_blocks=lane_blocks)


# --------------------------- pure-JAX reference ------------------------------

def bottleneck_reference(x, w1, bn1, w2, bn2, *, shortcut=True, eps=1e-3):
    def conv_bn_silu(inp, w, bn, pad):
        gamma, beta, mean, var = bn
        y = jax.lax.conv_general_dilated(
            inp, w, window_strides=(1, 1), padding=((pad, pad), (pad, pad)),
            dimension_numbers=("NCHW", "OIHW", "NCHW"),
            precision=jax.lax.Precision.HIGHEST)
        scale = gamma / jnp.sqrt(var + eps)
        y = y * scale[None, :, None, None] + (beta - mean * scale)[None, :, None, None]
        return y * jax.nn.sigmoid(y)

    y = conv_bn_silu(x, w1, bn1, pad=0)
    y = conv_bn_silu(y, w2, bn2, pad=1)
    add = shortcut and x.shape[1] == w2.shape[0]
    return x + y if add else y


# ----------------------------------- main ------------------------------------

if __name__ == "__main__":
    # Bottleneck(c1=8, c2=8, shortcut=True, e=0.5): cv1 1x1 8->4, cv2 3x3 4->8, +x.
    N, C1, C2 = 2, 8, 8
    C_ = int(C2 * 0.5)
    H = W = 16

    key = jax.random.PRNGKey(0)
    ks = jax.random.split(key, 8)

    def bn_stats(k, c):
        k1, k2, k3, k4 = jax.random.split(k, 4)
        gamma = 1.0 + 0.1 * jax.random.normal(k1, (c,), jnp.float32)
        beta = 0.05 * jax.random.normal(k2, (c,), jnp.float32)
        mean = 0.1 * jax.random.normal(k3, (c,), jnp.float32)
        var = 1.0 + 0.2 * jax.random.uniform(k4, (c,), jnp.float32)
        return gamma, beta, mean, var

    # conv weights (bias=False, as in the PyTorch module), PyTorch OIHW layout
    w1 = 0.2 * jax.random.normal(ks[0], (C_, C1, 1, 1), jnp.float32)
    w2 = 0.2 * jax.random.normal(ks[1], (C2, C_, 3, 3), jnp.float32)
    bn1 = bn_stats(ks[2], C_)
    bn2 = bn_stats(ks[3], C2)
    x = jax.random.normal(ks[4], (N, C1, H, W), jnp.float32)   # NCHW, like PyTorch

    ref = bottleneck_reference(x, w1, bn1, w2, bn2, shortcut=True)

    # 1) exactness check: f32 MXU operands, whole batch folded into one grid step.
    out_f32 = jax.block_until_ready(
        bottleneck_forward(x, w1, bn1, w2, bn2, shortcut=True,
                           mxu_dtype="float32", lane_blocks=1))
    assert out_f32.shape == (N, C2, H, W), out_f32.shape
    err_f32 = float(jnp.max(jnp.abs(out_f32 - ref)))
    assert jnp.allclose(out_f32, ref, rtol=1e-3, atol=3e-4), err_f32

    # 2) perf path: bf16 MXU operands, lane split chosen per detected chip.
    out_bf16 = jax.block_until_ready(
        bottleneck_forward(x, w1, bn1, w2, bn2, shortcut=True))
    err_bf16 = float(jnp.max(jnp.abs(out_bf16 - ref)))
    assert jnp.allclose(out_bf16, ref, rtol=2e-2, atol=2e-2), err_bf16

    # 3) explicitly exercise the 2-way "parallel" lane-block grid (v7x/megacore).
    out_g2 = jax.block_until_ready(
        bottleneck_forward(x, w1, bn1, w2, bn2, shortcut=True, lane_blocks=2))
    err_g2 = float(jnp.max(jnp.abs(out_g2 - ref)))
    assert jnp.allclose(out_g2, ref, rtol=2e-2, atol=2e-2), err_g2

    print("KERNEL_OK")
</pallas_src>

<mosaic_0001>
module attributes {stable_mosaic.version = 11 : i64} {
  func.func @bottleneck_kernel(%arg0: i32, %arg1: memref<8x512xf32, #tpu.memory_space<vmem>>, %arg2: memref<8x8xf32, #tpu.memory_space<vmem>>, %arg3: memref<8x1xf32, #tpu.memory_space<vmem>>, %arg4: memref<8x72xf32, #tpu.memory_space<vmem>>, %arg5: memref<8x1xf32, #tpu.memory_space<vmem>>, %arg6: memref<9x512xf32, #tpu.memory_space<vmem>>, %arg7: memref<8x512xf32, #tpu.memory_space<vmem>>) attributes {dimension_semantics = [#tpu.dimension_semantics<parallel>], iteration_bounds = array<i64: 1>, scalar_prefetch = 0 : i64, scratch_operands = 0 : i64, tpu.core_type = #tpu.core_type<tc>, window_params = [{transform_indices = @transform_0, window_bounds = array<i64: 8, 512>}, {pipeline_mode = #tpu.pipeline_mode<synchronous>, transform_indices = @transform_1, window_bounds = array<i64: 8, 8>}, {pipeline_mode = #tpu.pipeline_mode<synchronous>, transform_indices = @transform_2, window_bounds = array<i64: 8, 1>}, {pipeline_mode = #tpu.pipeline_mode<synchronous>, transform_indices = @transform_3, window_bounds = array<i64: 8, 72>}, {pipeline_mode = #tpu.pipeline_mode<synchronous>, transform_indices = @transform_4, window_bounds = array<i64: 8, 1>}, {pipeline_mode = #tpu.pipeline_mode<synchronous>, transform_indices = @transform_5, window_bounds = array<i64: 9, 512>}, {transform_indices = @transform_6, window_bounds = array<i64: 8, 512>}]} {
    %c0 = arith.constant 0 : index
    %c0_0 = arith.constant 0 : index
    %0 = vector.load %arg1[%c0, %c0_0] : memref<8x512xf32, #tpu.memory_space<vmem>>, vector<8x512xf32>
    %c0_1 = arith.constant 0 : index
    %c0_2 = arith.constant 0 : index
    %1 = vector.load %arg2[%c0_1, %c0_2] : memref<8x8xf32, #tpu.memory_space<vmem>>, vector<8x8xf32>
    %cst = arith.constant dense<0.000000e+00> : vector<8x512xf32>
    %2 = tpu.matmul %1, %0, %cst {dimension_numbers = #tpu.dot_dimension_numbers<[1], [0], [0], [1], [0, 0, 1, 1], [], []>} : vector<8x8xf32>, vector<8x512xf32>, vector<8x512xf32> -> vector<8x512xf32>
    %c0_3 = arith.constant 0 : index
    %c0_4 = arith.constant 0 : index
    %3 = vector.load %arg3[%c0_3, %c0_4] : memref<8x1xf32, #tpu.memory_space<vmem>>, vector<8x1xf32>
    %4 = vector.broadcast %3 : vector<8x1xf32> to vector<8x512xf32>
    %5 = arith.addf %2, %4 : vector<8x512xf32>
    %6 = arith.negf %5 : vector<8x512xf32>
    %7 = math.exp %6 : vector<8x512xf32>
    %cst_5 = arith.constant 1.000000e+00 : f32
    %8 = vector.broadcast %cst_5 : f32 to vector<8x512xf32>
    %9 = arith.addf %8, %7 : vector<8x512xf32>
    %10 = arith.divf %8, %9 : vector<8x512xf32>
    %11 = arith.mulf %5, %10 : vector<8x512xf32>
    %c0_6 = arith.constant 0 : index
    %c0_7 = arith.constant 0 : index
    %12 = vector.load %arg6[%c0_6, %c0_7] : memref<9x512xf32, #tpu.memory_space<vmem>>, vector<9x512xf32>
    %c17_i32 = arith.constant 17 : i32
    %13 = tpu.dynamic_rotate %11 by %c17_i32 dim 1 : vector<8x512xf32>, i32 -> vector<8x512xf32>
    %14 = vector.extract_strided_slice %12 {offsets = [0, 0], sizes = [1, 512], strides = [1, 1]} : vector<9x512xf32> to vector<1x512xf32>
    %15 = vector.broadcast %14 : vector<1x512xf32> to vector<8x512xf32>
    %16 = arith.mulf %13, %15 : vector<8x512xf32>
    %c16_i32 = arith.constant 16 : i32
    %17 = tpu.dynamic_rotate %11 by %c16_i32 dim 1 : vector<8x512xf32>, i32 -> vector<8x512xf32>
    %18 = vector.extract_strided_slice %12 {offsets = [1, 0], sizes = [1, 512], strides = [1, 1]} : vector<9x512xf32> to vector<1x512xf32>
    %19 = vector.broadcast %18 : vector<1x512xf32> to vector<8x512xf32>
    %20 = arith.mulf %17, %19 : vector<8x512xf32>
    %c15_i32 = arith.constant 15 : i32
    %21 = tpu.dynamic_rotate %11 by %c15_i32 dim 1 : vector<8x512xf32>, i32 -> vector<8x512xf32>
    %22 = vector.extract_strided_slice %12 {offsets = [2, 0], sizes = [1, 512], strides = [1, 1]} : vector<9x512xf32> to vector<1x512xf32>
    %23 = vector.broadcast %22 : vector<1x512xf32> to vector<8x512xf32>
    %24 = arith.mulf %21, %23 : vector<8x512xf32>
    %c1_i32 = arith.constant 1 : i32
    %25 = tpu.dynamic_rotate %11 by %c1_i32 dim 1 : vector<8x512xf32>, i32 -> vector<8x512xf32>
    %26 = vector.extract_strided_slice %12 {offsets = [3, 0], sizes = [1, 512], strides = [1, 1]} : vector<9x512xf32> to vector<1x512xf32>
    %27 = vector.broadcast %26 : vector<1x512xf32> to vector<8x512xf32>
    %28 = arith.mulf %25, %27 : vector<8x512xf32>
    %29 = vector.extract_strided_slice %12 {offsets = [4, 0], sizes = [1, 512], strides = [1, 1]} : vector<9x512xf32> to vector<1x512xf32>
    %30 = vector.broadcast %29 : vector<1x512xf32> to vector<8x512xf32>
    %31 = arith.mulf %11, %30 : vector<8x512xf32>
    %c511_i32 = arith.constant 511 : i32
    %32 = tpu.dynamic_rotate %11 by %c511_i32 dim 1 : vector<8x512xf32>, i32 -> vector<8x512xf32>
    %33 = vector.extract_strided_slice %12 {offsets = [5, 0], sizes = [1, 512], strides = [1, 1]} : vector<9x512xf32> to vector<1x512xf32>
    %34 = vector.broadcast %33 : vector<1x512xf32> to vector<8x512xf32>
    %35 = arith.mulf %32, %34 : vector<8x512xf32>
    %c497_i32 = arith.constant 497 : i32
    %36 = tpu.dynamic_rotate %11 by %c497_i32 dim 1 : vector<8x512xf32>, i32 -> vector<8x512xf32>
    %37 = vector.extract_strided_slice %12 {offsets = [6, 0], sizes = [1, 512], strides = [1, 1]} : vector<9x512xf32> to vector<1x512xf32>
    %38 = vector.broadcast %37 : vector<1x512xf32> to vector<8x512xf32>
    %39 = arith.mulf %36, %38 : vector<8x512xf32>
    %c496_i32 = arith.constant 496 : i32
    %40 = tpu.dynamic_rotate %11 by %c496_i32 dim 1 : vector<8x512xf32>, i32 -> vector<8x512xf32>
    %41 = vector.extract_strided_slice %12 {offsets = [7, 0], sizes = [1, 512], strides = [1, 1]} : vector<9x512xf32> to vector<1x512xf32>
    %42 = vector.broadcast %41 : vector<1x512xf32> to vector<8x512xf32>
    %43 = arith.mulf %40, %42 : vector<8x512xf32>
    %c495_i32 = arith.constant 495 : i32
    %44 = tpu.dynamic_rotate %11 by %c495_i32 dim 1 : vector<8x512xf32>, i32 -> vector<8x512xf32>
    %45 = vector.extract_strided_slice %12 {offsets = [8, 0], sizes = [1, 512], strides = [1, 1]} : vector<9x512xf32> to vector<1x512xf32>
    %46 = vector.broadcast %45 : vector<1x512xf32> to vector<8x512xf32>
    %47 = arith.mulf %44, %46 : vector<8x512xf32>
    %48 = tpu.concatenate %16, %20, %24, %28, %31, %35, %39, %43, %47 in 0 : vector<8x512xf32>, vector<8x512xf32>, vector<8x512xf32>, vector<8x512xf32>, vector<8x512xf32>, vector<8x512xf32>, vector<8x512xf32>, vector<8x512xf32>, vector<8x512xf32> -> vector<72x512xf32>
    %c0_8 = arith.constant 0 : index
    %c0_9 = arith.constant 0 : index
    %49 = vector.load %arg4[%c0_8, %c0_9] : memref<8x72xf32, #tpu.memory_space<vmem>>, vector<8x72xf32>
    %cst_10 = arith.constant dense<0.000000e+00> : vector<8x512xf32>
    %50 = tpu.matmul %49, %48, %cst_10 {dimension_numbers = #tpu.dot_dimension_numbers<[1], [0], [0], [1], [0, 0, 1, 1], [], []>} : vector<8x72xf32>, vector<72x512xf32>, vector<8x512xf32> -> vector<8x512xf32>
    %c0_11 = arith.constant 0 : index
    %c0_12 = arith.constant 0 : index
    %51 = vector.load %arg5[%c0_11, %c0_12] : memref<8x1xf32, #tpu.memory_space<vmem>>, vector<8x1xf32>
    %52 = vector.broadcast %51 : vector<8x1xf32> to vector<8x512xf32>
    %53 = arith.addf %50, %52 : vector<8x512xf32>
    %54 = arith.negf %53 : vector<8x512xf32>
    %55 = math.exp %54 : vector<8x512xf32>
    %cst_13 = arith.constant 1.000000e+00 : f32
    %56 = vector.broadcast %cst_13 : f32 to vector<8x512xf32>
    %57 = arith.addf %56, %55 : vector<8x512xf32>
    %58 = arith.divf %56, %57 : vector<8x512xf32>
    %59 = arith.mulf %53, %58 : vector<8x512xf32>
    %60 = arith.addf %59, %0 : vector<8x512xf32>
    %c0_14 = arith.constant 0 : index
    %c0_15 = arith.constant 0 : index
    %61 = vector.load %arg7[%c0_14, %c0_15] : memref<8x512xf32, #tpu.memory_space<vmem>>, vector<8x512xf32>
    tpu.vector_store %arg7[%c0_14, %c0_15], %60 {strides = array<i32>} : memref<8x512xf32, #tpu.memory_space<vmem>>, vector<8x512xf32>,
    return
  }
  func.func @transform_0(%arg0: i32) -> (i32, i32) {
    %c0_i32 = arith.constant 0 : i32
    %c0_i32_0 = arith.constant 0 : i32
    return %c0_i32, %arg0 : i32, i32
  }
  func.func @transform_1(%arg0: i32) -> (i32, i32) {
    %c0_i32 = arith.constant 0 : i32
    %c0_i32_0 = arith.constant 0 : i32
    %c0_i32_1 = arith.constant 0 : i32
    return %c0_i32, %c0_i32_0 : i32, i32
  }
  func.func @transform_2(%arg0: i32) -> (i32, i32) {
    %c0_i32 = arith.constant 0 : i32
    %c0_i32_0 = arith.constant 0 : i32
    %c0_i32_1 = arith.constant 0 : i32
    return %c0_i32, %c0_i32_0 : i32, i32
  }
  func.func @transform_3(%arg0: i32) -> (i32, i32) {
    %c0_i32 = arith.constant 0 : i32
    %c0_i32_0 = arith.constant 0 : i32
    %c0_i32_1 = arith.constant 0 : i32
    return %c0_i32, %c0_i32_0 : i32, i32
  }
  func.func @transform_4(%arg0: i32) -> (i32, i32) {
    %c0_i32 = arith.constant 0 : i32
    %c0_i32_0 = arith.constant 0 : i32
    %c0_i32_1 = arith.constant 0 : i32
    return %c0_i32, %c0_i32_0 : i32, i32
  }
  func.func @transform_5(%arg0: i32) -> (i32, i32) {
    %c0_i32 = arith.constant 0 : i32
    %c0_i32_0 = arith.constant 0 : i32
    %c0_i32_1 = arith.constant 0 : i32
    return %c0_i32, %c0_i32_0 : i32, i32
  }
  func.func @transform_6(%arg0: i32) -> (i32, i32) {
    %c0_i32 = arith.constant 0 : i32
    %c0_i32_0 = arith.constant 0 : i32
    return %c0_i32, %arg0 : i32, i32
  }
}

</mosaic_0001>

<llo_original>
// kernel: _bottleneck_forward.1
$region0: #{_bottleneck_forward.1}
  #allocation0 [shape = 'u32[]', space=smem, size = 0x4, offset = 0x4, fixed_abs, tag = 'smem constant byte address 0x4 - core index']
  #allocation1 [shape = 'u32[144,128]{1,0:T(1,128)}', space=vmem, size = 0x12000, scoped, tag = 'internal scratch']
  %s0 = inlined_call_operand.vmem [shape: f32[8,512], index: 0, kind: input, shape index: {}, may-alias: {0,6}]
  %s1 = inlined_call_operand.vmem [shape: f32[8,8], index: 1, kind: input, shape index: {}]
  %s2 = inlined_call_operand.vmem [shape: f32[8,1], index: 2, kind: input, shape index: {}]
  %s3 = inlined_call_operand.vmem [shape: f32[8,72], index: 3, kind: input, shape index: {}]
  %s4 = inlined_call_operand.vmem [shape: f32[8,1], index: 4, kind: input, shape index: {}]
  %s5 = inlined_call_operand.vmem [shape: f32[9,512], index: 5, kind: input, shape index: {}]
  %s6 = inlined_call_operand.vmem [shape: f32[8,512], index: 6, kind: output, shape index: {}, may-alias: {0,6}]
  %s7 = sld [smem:[#allocation0]]
  $region34: #{_bottleneck_forward.1} parent=0
    _
  %s9 = ssub.s32 1, %s7
  %s10 = scalar_select 0, %s9, %s7
  // Predicated region
  $region2: #{_bottleneck_forward.1} parent=0 // pred_check
    _
  $region3: #{_bottleneck_forward.1} parent=0 // pred_check_branch
    %12 = sbr.rel (0) target = $region5
  $region4: #{_bottleneck_forward.1} parent=0 // pred_region
    _
  $region5: #{_bottleneck_forward.1} parent=0 // pred_fallthru
    _
  // Predicated region
  $region6: #{_bottleneck_forward.1} parent=0 // pred_check
    _
  $region7: #{_bottleneck_forward.1} parent=0 // pred_check_branch
    %14 = sbr.rel (0) target = $region9
  $region8: #{_bottleneck_forward.1} parent=0 // pred_region
    _
  $region9: #{_bottleneck_forward.1} parent=0 // pred_fallthru
    _
  // Predicated region
  $region10: #{_bottleneck_forward.1} parent=0 // pred_check
    _
  $region11: #{_bottleneck_forward.1} parent=0 // pred_check_branch
    %16 = sbr.rel (0) target = $region13
  $region12: #{_bottleneck_forward.1} parent=0 // pred_region
    _
  $region13: #{_bottleneck_forward.1} parent=0 // pred_fallthru
    _
  // Predicated region
  $region14: #{_bottleneck_forward.1} parent=0 // pred_check
    _
  $region15: #{_bottleneck_forward.1} parent=0 // pred_check_branch
    %18 = sbr.rel (0) target = $region17
  $region16: #{_bottleneck_forward.1} parent=0 // pred_region
    _
  $region17: #{_bottleneck_forward.1} parent=0 // pred_fallthru
    _
  // Predicated region
  $region18: #{_bottleneck_forward.1} parent=0 // pred_check
    _
  $region19: #{_bottleneck_forward.1} parent=0 // pred_check_branch
    %20 = sbr.rel (0) target = $region21
  $region20: #{_bottleneck_forward.1} parent=0 // pred_region
    _
  $region21: #{_bottleneck_forward.1} parent=0 // pred_fallthru
    _
  // Predicated region
  $region22: #{_bottleneck_forward.1} parent=0 // pred_check
    _
  $region23: #{_bottleneck_forward.1} parent=0 // pred_check_branch
    %22 = sbr.rel (0) target = $region25
  $region24: #{_bottleneck_forward.1} parent=0 // pred_region
    _
  $region25: #{_bottleneck_forward.1} parent=0 // pred_fallthru
    _
  %v23 = vld [vmem:[%s0] sm:$0xff]
  %v24 = vld [vmem:[%s0 + $0x8] sm:$0xff]
  %v25 = vld [vmem:[%s0 + $0x10] sm:$0xff]
  %v26 = vld [vmem:[%s0 + $0x18] sm:$0xff]
  %v27 = vld [vmem:[%s1] sm:$0xff]
  %v28 = vld [vmem:[%s2] sm:$0xff]
  %30 = vset.pattern.permute.xlu0 0
  %31 = vperm.xlu0 %30, %v28
  %v32 = vpop.permute.xlu0 %31
  %vm34 = vcmask 64512
  %v36 = vsel %vm34, %v27, 0
  %38 = vmatprep.subr.mxu0 0.0
  %39 = vmatpush1.msra.mxu0 0.0
  %40 = vmatprep.subr.mxu0 0.0
  %41 = vmatpush1.msra.mxu0 0.0
  %42 = vmatprep.subr.mxu0 0.0
  %43 = vmatpush1.msra.mxu0 0.0
  %44 = vmatprep.subr.mxu0 0.0
  %45 = vmatpush1.msra.mxu0 0.0
  %46 = vmatprep.subr.mxu0 0.0
  %47 = vmatpush1.msra.mxu0 0.0
  %48 = vmatprep.subr.mxu0 0.0
  %49 = vmatpush1.msra.mxu0 0.0
  %50 = vmatprep.subr.mxu0 0.0
  %51 = vmatpush1.msra.mxu0 0.0
  %52 = vmatprep.subr.mxu0 0.0
  %53 = vmatpush1.msra.mxu0 0.0
  %54 = vmatprep.subr.mxu0 0.0
  %55 = vmatpush1.msra.mxu0 0.0
  %56 = vmatprep.subr.mxu0 0.0
  %57 = vmatpush1.msra.mxu0 0.0
  %58 = vmatprep.subr.mxu0 0.0
  %59 = vmatpush1.msra.mxu0 0.0
  %60 = vmatprep.subr.mxu0 0.0
  %61 = vmatpush1.msra.mxu0 0.0
  %62 = vmatprep.subr.mxu0 0.0
  %63 = vmatpush1.msra.mxu0 0.0
  %64 = vmatprep.subr.mxu0 0.0
  %65 = vmatpush1.msra.mxu0 0.0
  %66 = vmatprep.subr.mxu0 0.0
  %67 = vmatpush1.msra.mxu0 0.0
  %68 = vmatprep.subr.mxu0 %v24
  %69 = vmatpush1.msra.mxu0 %v23
  %70 = vmatprep.subr.mxu0 0.0
  %71 = vmatpush2.msra.mxu0 0.0
  %72 = vmatprep.subr.mxu0 0.0
  %73 = vmatpush2.msra.mxu0 0.0
  %74 = vmatprep.subr.mxu0 0.0
  %75 = vmatpush2.msra.mxu0 0.0
  %76 = vmatprep.subr.mxu0 0.0
  %77 = vmatpush2.msra.mxu0 0.0
  %78 = vmatprep.subr.mxu0 0.0
  %79 = vmatpush2.msra.mxu0 0.0
  %80 = vmatprep.subr.mxu0 0.0
  %81 = vmatpush2.msra.mxu0 0.0
  %82 = vmatprep.subr.mxu0 0.0
  %83 = vmatpush2.msra.mxu0 0.0
  %84 = vmatprep.subr.mxu0 0.0
  %85 = vmatpush2.msra.mxu0 0.0
  %86 = vmatprep.subr.mxu0 0.0
  %87 = vmatpush2.msra.mxu0 0.0
  %88 = vmatprep.subr.mxu0 0.0
  %89 = vmatpush2.msra.mxu0 0.0
  %90 = vmatprep.subr.mxu0 0.0
  %91 = vmatpush2.msra.mxu0 0.0
  %92 = vmatprep.subr.mxu0 0.0
  %93 = vmatpush2.msra.mxu0 0.0
  %94 = vmatprep.subr.mxu0 0.0
  %95 = vmatpush2.msra.mxu0 0.0
  %96 = vmatprep.subr.mxu0 0.0
  %97 = vmatpush2.msra.mxu0 0.0
  %98 = vmatprep.subr.mxu0 0.0
  %99 = vmatpush2.msra.mxu0 0.0
  %100 = vmatprep.subr.mxu0 0.0
  %101 = vmatpush2.msra.mxu0 0.0
  %102 = vmatprep.mubr.f32.mxu0 0.0
  %103 = vmatmul.mubr.f32.gmra.mxu0 %v36
  %v104 = vpop.f32.mrf.mxu0
  %v105 = vadd.f32 %v32, %v104
  %v106 = vpop.f32.mrf.mxu0
  %v107 = vadd.f32 %v32, %v106
  %108 = vdwg.mxu0
  %109 = vmatprep.subr.mxu0 0.0
  %110 = vmatpush1.msra.mxu0 0.0
  %111 = vmatprep.subr.mxu0 0.0
  %112 = vmatpush1.msra.mxu0 0.0
  %113 = vmatprep.subr.mxu0 0.0
  %114 = vmatpush1.msra.mxu0 0.0
  %115 = vmatprep.subr.mxu0 0.0
  %116 = vmatpush1.msra.mxu0 0.0
  %117 = vmatprep.subr.mxu0 0.0
  %118 = vmatpush1.msra.mxu0 0.0
  %119 = vmatprep.subr.mxu0 0.0
  %120 = vmatpush1.msra.mxu0 0.0
  %121 = vmatprep.subr.mxu0 0.0
  %122 = vmatpush1.msra.mxu0 0.0
  %123 = vmatprep.subr.mxu0 0.0
  %124 = vmatpush1.msra.mxu0 0.0
  %125 = vmatprep.subr.mxu0 0.0
  %126 = vmatpush1.msra.mxu0 0.0
  %127 = vmatprep.subr.mxu0 0.0
  %128 = vmatpush1.msra.mxu0 0.0
  %129 = vmatprep.subr.mxu0 0.0
  %130 = vmatpush1.msra.mxu0 0.0
  %131 = vmatprep.subr.mxu0 0.0
  %132 = vmatpush1.msra.mxu0 0.0
  %133 = vmatprep.subr.mxu0 0.0
  %134 = vmatpush1.msra.mxu0 0.0
  %135 = vmatprep.subr.mxu0 0.0
  %136 = vmatpush1.msra.mxu0 0.0
  %137 = vmatprep.subr.mxu0 0.0
  %138 = vmatpush1.msra.mxu0 0.0
  %139 = vmatprep.subr.mxu0 %v26
  %140 = vmatpush1.msra.mxu0 %v25
  %141 = vmatprep.subr.mxu0 0.0
  %142 = vmatpush2.msra.mxu0 0.0
  %143 = vmatprep.subr.mxu0 0.0
  %144 = vmatpush2.msra.mxu0 0.0
  %145 = vmatprep.subr.mxu0 0.0
  %146 = vmatpush2.msra.mxu0 0.0
  %147 = vmatprep.subr.mxu0 0.0
  %148 = vmatpush2.msra.mxu0 0.0
  %149 = vmatprep.subr.mxu0 0.0
  %150 = vmatpush2.msra.mxu0 0.0
  %151 = vmatprep.subr.mxu0 0.0
  %152 = vmatpush2.msra.mxu0 0.0
  %153 = vmatprep.subr.mxu0 0.0
  %154 = vmatpush2.msra.mxu0 0.0
  %155 = vmatprep.subr.mxu0 0.0
  %156 = vmatpush2.msra.mxu0 0.0
  %157 = vmatprep.subr.mxu0 0.0
  %158 = vmatpush2.msra.mxu0 0.0
  %159 = vmatprep.subr.mxu0 0.0
  %160 = vmatpush2.msra.mxu0 0.0
  %161 = vmatprep.subr.mxu0 0.0
  %162 = vmatpush2.msra.mxu0 0.0
  %163 = vmatprep.subr.mxu0 0.0
  %164 = vmatpush2.msra.mxu0 0.0
  %165 = vmatprep.subr.mxu0 0.0
  %166 = vmatpush2.msra.mxu0 0.0
  %167 = vmatprep.subr.mxu0 0.0
  %168 = vmatpush2.msra.mxu0 0.0
  %169 = vmatprep.subr.mxu0 0.0
  %170 = vmatpush2.msra.mxu0 0.0
  %171 = vmatprep.subr.mxu0 0.0
  %172 = vmatpush2.msra.mxu0 0.0
  %173 = vmatprep.mubr.f32.mxu0 0.0
  %174 = vmatmul.mubr.f32.gmra.mxu0 %v36
  %v175 = vpop.f32.mrf.mxu0
  %v176 = vadd.f32 %v32, %v175
  %v177 = vpop.f32.mrf.mxu0
  %v178 = vadd.f32 %v32, %v177
  %179 = vdwg.mxu0
  %v180 = vxor.u32 %v105, 2147483648
  %v181 = vxor.u32 %v107, 2147483648
  %v182 = vxor.u32 %v176, 2147483648
  %v183 = vxor.u32 %v178, 2147483648
  %v184 = vmul.f32 %v180, 1.442695
  %v185 = vpow.pop %v184
  %v186 = vmul.f32 %v181, 1.442695
  %v187 = vpow.pop %v186
  %v188 = vmul.f32 %v182, 1.442695
  %v189 = vpow.pop %v188
  %v190 = vmul.f32 %v183, 1.442695
  %v191 = vpow.pop %v190
  %v192 = vadd.f32 %v185, 1.0
  %v193 = vadd.f32 %v187, 1.0
  %v194 = vadd.f32 %v189, 1.0
  %v195 = vadd.f32 %v191, 1.0
  %v196 = vrcp.pop %v192
  %v197 = vmul.f32 1.0, %v196
  %v198 = vrcp.pop %v193
  %v199 = vmul.f32 1.0, %v198
  %v200 = vrcp.pop %v194
  %v201 = vmul.f32 1.0, %v200
  %v202 = vrcp.pop %v195
  %v203 = vmul.f32 1.0, %v202
  %v204 = vmul.f32 %v105, %v197
  %v205 = vmul.f32 %v107, %v199
  %v206 = vmul.f32 %v176, %v201
  %v207 = vmul.f32 %v178, %v203
  %v208 = vld [vmem:[%s5] sm:$0xff]
  %v209 = vld [vmem:[%s5 + $0x8] sm:$0xff]
  %v210 = vld [vmem:[%s5 + $0x10] sm:$0xff]
  %v211 = vld [vmem:[%s5 + $0x18] sm:$0xff]
  %v212 = vld [vmem:[%s5 + $0x20] sm:$0x1]
  %v213 = vld [vmem:[%s5 + $0x28] sm:$0x1]
  %v214 = vld [vmem:[%s5 + $0x30] sm:$0x1]
  %v215 = vld [vmem:[%s5 + $0x38] sm:$0x1]
  %216 = vrot.lane.b32.xlu0 %v204, 17
  %v217 = vpop.permute.xlu0 %216
  %218 = vrot.lane.b32.xlu0 %v205, 17
  %v219 = vpop.permute.xlu0 %218
  %220 = vrot.lane.b32.xlu0 %v206, 17
  %v221 = vpop.permute.xlu0 %220
  %222 = vrot.lane.b32.xlu0 %v207, 17
  %v223 = vpop.permute.xlu0 %222
  %v224 = vlaneseq
  %v225 = vand.u32 %v224, 127
  %vm226 = vcmp.lt.s32.totalorder %v225, 17
  %v227 = vsel %vm226, %v221, %v223
  %v228 = vsel %vm226, %v219, %v221
  %v229 = vsel %vm226, %v217, %v219
  %v230 = vsel %vm226, %v223, %v217
  %v231 = vlaneseq
  %v232 = vshrl.u32 %v231, 7
  %v233 = vsub.s32 0, %v232
  %v234 = vrot.slane %v208, %v233
  %v235 = vlaneseq
  %v236 = vshrl.u32 %v235, 7
  %v237 = vsub.s32 0, %v236
  %v238 = vrot.slane %v209, %v237
  %v239 = vlaneseq
  %v240 = vshrl.u32 %v239, 7
  %v241 = vsub.s32 0, %v240
  %v242 = vrot.slane %v210, %v241
  %v243 = vlaneseq
  %v244 = vshrl.u32 %v243, 7
  %v245 = vsub.s32 0, %v244
  %v246 = vrot.slane %v211, %v245
  %v247 = vmul.f32 %v230, %v234
  %v248 = vmul.f32 %v229, %v238
  %v249 = vmul.f32 %v228, %v242
  %v250 = vmul.f32 %v227, %v246
  %251 = vrot.lane.b32.xlu0 %v204, 16
  %v252 = vpop.permute.xlu0 %251
  %253 = vrot.lane.b32.xlu0 %v205, 16
  %v254 = vpop.permute.xlu0 %253
  %255 = vrot.lane.b32.xlu0 %v206, 16
  %v256 = vpop.permute.xlu0 %255
  %257 = vrot.lane.b32.xlu0 %v207, 16
  %v258 = vpop.permute.xlu0 %257
  %vm259 = vcmp.lt.s32.totalorder %v225, 16
  %v260 = vsel %vm259, %v256, %v258
  %v261 = vsel %vm259, %v254, %v256
  %v262 = vsel %vm259, %v252, %v254
  %v263 = vsel %vm259, %v258, %v252
  %v264 = vlaneseq
  %v265 = vshrl.u32 %v264, 7
  %v266 = vsub.s32 1, %v265
  %v267 = vrot.slane %v208, %v266
  %v268 = vlaneseq
  %v269 = vshrl.u32 %v268, 7
  %v270 = vsub.s32 1, %v269
  %v271 = vrot.slane %v209, %v270
  %v272 = vlaneseq
  %v273 = vshrl.u32 %v272, 7
  %v274 = vsub.s32 1, %v273
  %v275 = vrot.slane %v210, %v274
  %v276 = vlaneseq
  %v277 = vshrl.u32 %v276, 7
  %v278 = vsub.s32 1, %v277
  %v279 = vrot.slane %v211, %v278
  %v280 = vmul.f32 %v263, %v267
  %v281 = vmul.f32 %v262, %v271
  %v282 = vmul.f32 %v261, %v275
  %v283 = vmul.f32 %v260, %v279
  %284 = vrot.lane.b32.xlu0 %v204, 15
  %v285 = vpop.permute.xlu0 %284
  %286 = vrot.lane.b32.xlu0 %v205, 15
  %v287 = vpop.permute.xlu0 %286
  %288 = vrot.lane.b32.xlu0 %v206, 15
  %v289 = vpop.permute.xlu0 %288
  %290 = vrot.lane.b32.xlu0 %v207, 15
  %v291 = vpop.permute.xlu0 %290
  %vm292 = vcmp.lt.s32.totalorder %v225, 15
  %v293 = vsel %vm292, %v289, %v291
  %v294 = vsel %vm292, %v287, %v289
  %v295 = vsel %vm292, %v285, %v287
  %v296 = vsel %vm292, %v291, %v285
  %v297 = vlaneseq
  %v298 = vshrl.u32 %v297, 7
  %v299 = vsub.s32 2, %v298
  %v300 = vrot.slane %v208, %v299
  %v301 = vlaneseq
  %v302 = vshrl.u32 %v301, 7
  %v303 = vsub.s32 2, %v302
  %v304 = vrot.slane %v209, %v303
  %v305 = vlaneseq
  %v306 = vshrl.u32 %v305, 7
  %v307 = vsub.s32 2, %v306
  %v308 = vrot.slane %v210, %v307
  %v309 = vlaneseq
  %v310 = vshrl.u32 %v309, 7
  %v311 = vsub.s32 2, %v310
  %v312 = vrot.slane %v211, %v311
  %v313 = vmul.f32 %v296, %v300
  %v314 = vmul.f32 %v295, %v304
  %v315 = vmul.f32 %v294, %v308
  %v316 = vmul.f32 %v293, %v312
  %317 = vrot.lane.b32.xlu0 %v204, 1
  %v318 = vpop.permute.xlu0 %317
  %319 = vrot.lane.b32.xlu0 %v205, 1
  %v320 = vpop.permute.xlu0 %319
  %321 = vrot.lane.b32.xlu0 %v206, 1
  %v322 = vpop.permute.xlu0 %321
  %323 = vrot.lane.b32.xlu0 %v207, 1
  %v324 = vpop.permute.xlu0 %323
  %vm325 = vcmp.lt.s32.totalorder %v225, 1
  %v326 = vsel %vm325, %v322, %v324
  %v327 = vsel %vm325, %v320, %v322
  %v328 = vsel %vm325, %v318, %v320
  %v329 = vsel %vm325, %v324, %v318
  %v330 = vlaneseq
  %v331 = vshrl.u32 %v330, 7
  %v332 = vsub.s32 3, %v331
  %v333 = vrot.slane %v208, %v332
  %v334 = vlaneseq
  %v335 = vshrl.u32 %v334, 7
  %v336 = vsub.s32 3, %v335
  %v337 = vrot.slane %v209, %v336
  %v338 = vlaneseq
  %v339 = vshrl.u32 %v338, 7
  %v340 = vsub.s32 3, %v339
  %v341 = vrot.slane %v210, %v340
  %v342 = vlaneseq
  %v343 = vshrl.u32 %v342, 7
  %v344 = vsub.s32 3, %v343
  %v345 = vrot.slane %v211, %v344
  %v346 = vmul.f32 %v329, %v333
  %v347 = vmul.f32 %v328, %v337
  %v348 = vmul.f32 %v327, %v341
  %v349 = vmul.f32 %v326, %v345
  %v350 = vlaneseq
  %v351 = vshrl.u32 %v350, 7
  %v352 = vsub.s32 4, %v351
  %v353 = vrot.slane %v208, %v352
  %v354 = vlaneseq
  %v355 = vshrl.u32 %v354, 7
  %v356 = vsub.s32 4, %v355
  %v357 = vrot.slane %v209, %v356
  %v358 = vlaneseq
  %v359 = vshrl.u32 %v358, 7
  %v360 = vsub.s32 4, %v359
  %v361 = vrot.slane %v210, %v360
  %v362 = vlaneseq
  %v363 = vshrl.u32 %v362, 7
  %v364 = vsub.s32 4, %v363
  %v365 = vrot.slane %v211, %v364
  %v366 = vmul.f32 %v204, %v353
  %v367 = vmul.f32 %v205, %v357
  %v368 = vmul.f32 %v206, %v361
  %v369 = vmul.f32 %v207, %v365
  %370 = vrot.lane.b32.xlu0 %v204, 127
  %v371 = vpop.permute.xlu0 %370
  %372 = vrot.lane.b32.xlu0 %v205, 127
  %v373 = vpop.permute.xlu0 %372
  %374 = vrot.lane.b32.xlu0 %v206, 127
  %v375 = vpop.permute.xlu0 %374
  %376 = vrot.lane.b32.xlu0 %v207, 127
  %v377 = vpop.permute.xlu0 %376
  %vm378 = vcmp.lt.s32.totalorder %v225, 127
  %v379 = vsel %vm378, %v375, %v377
  %v380 = vsel %vm378, %v373, %v375
  %v381 = vsel %vm378, %v371, %v373
  %v382 = vsel %vm378, %v377, %v371
  %v383 = vlaneseq
  %v384 = vshrl.u32 %v383, 7
  %v385 = vsub.s32 5, %v384
  %v386 = vrot.slane %v208, %v385
  %v387 = vlaneseq
  %v388 = vshrl.u32 %v387, 7
  %v389 = vsub.s32 5, %v388
  %v390 = vrot.slane %v209, %v389
  %v391 = vlaneseq
  %v392 = vshrl.u32 %v391, 7
  %v393 = vsub.s32 5, %v392
  %v394 = vrot.slane %v210, %v393
  %v395 = vlaneseq
  %v396 = vshrl.u32 %v395, 7
  %v397 = vsub.s32 5, %v396
  %v398 = vrot.slane %v211, %v397
  %v399 = vmul.f32 %v381, %v386
  %v400 = vmul.f32 %v380, %v390
  %v401 = vmul.f32 %v379, %v394
  %v402 = vmul.f32 %v382, %v398
  %403 = vrot.lane.b32.xlu0 %v204, 113
  %v404 = vpop.permute.xlu0 %403
  %405 = vrot.lane.b32.xlu0 %v205, 113
  %v406 = vpop.permute.xlu0 %405
  %407 = vrot.lane.b32.xlu0 %v206, 113
  %v408 = vpop.permute.xlu0 %407
  %409 = vrot.lane.b32.xlu0 %v207, 113
  %v410 = vpop.permute.xlu0 %409
  %vm411 = vcmp.lt.s32.totalorder %v225, 113
  %v412 = vsel %vm411, %v408, %v410
  %v413 = vsel %vm411, %v406, %v408
  %v414 = vsel %vm411, %v404, %v406
  %v415 = vsel %vm411, %v410, %v404
  %v416 = vlaneseq
  %v417 = vshrl.u32 %v416, 7
  %v418 = vsub.s32 6, %v417
  %v419 = vrot.slane %v208, %v418
  %v420 = vlaneseq
  %v421 = vshrl.u32 %v420, 7
  %v422 = vsub.s32 6, %v421
  %v423 = vrot.slane %v209, %v422
  %v424 = vlaneseq
  %v425 = vshrl.u32 %v424, 7
  %v426 = vsub.s32 6, %v425
  %v427 = vrot.slane %v210, %v426
  %v428 = vlaneseq
  %v429 = vshrl.u32 %v428, 7
  %v430 = vsub.s32 6, %v429
  %v431 = vrot.slane %v211, %v430
  %v432 = vmul.f32 %v414, %v419
  %v433 = vmul.f32 %v413, %v423
  %v434 = vmul.f32 %v412, %v427
  %v435 = vmul.f32 %v415, %v431
  %436 = vrot.lane.b32.xlu0 %v204, 112
  %v437 = vpop.permute.xlu0 %436
  %438 = vrot.lane.b32.xlu0 %v205, 112
  %v439 = vpop.permute.xlu0 %438
  %440 = vrot.lane.b32.xlu0 %v206, 112
  %v441 = vpop.permute.xlu0 %440
  %442 = vrot.lane.b32.xlu0 %v207, 112
  %v443 = vpop.permute.xlu0 %442
  %vm444 = vcmp.lt.s32.totalorder %v225, 112
  %v445 = vsel %vm444, %v441, %v443
  %v446 = vsel %vm444, %v439, %v441
  %v447 = vsel %vm444, %v437, %v439
  %v448 = vsel %vm444, %v443, %v437
  %v449 = vlaneseq
  %v450 = vshrl.u32 %v449, 7
  %v451 = vsub.s32 7, %v450
  %v452 = vrot.slane %v208, %v451
  %v453 = vlaneseq
  %v454 = vshrl.u32 %v453, 7
  %v455 = vsub.s32 7, %v454
  %v456 = vrot.slane %v209, %v455
  %v457 = vlaneseq
  %v458 = vshrl.u32 %v457, 7
  %v459 = vsub.s32 7, %v458
  %v460 = vrot.slane %v210, %v459
  %v461 = vlaneseq
  %v462 = vshrl.u32 %v461, 7
  %v463 = vsub.s32 7, %v462
  %v464 = vrot.slane %v211, %v463
  %v465 = vmul.f32 %v447, %v452
  %v466 = vmul.f32 %v446, %v456
  %v467 = vmul.f32 %v445, %v460
  %v468 = vmul.f32 %v448, %v464
  %469 = vrot.lane.b32.xlu0 %v204, 111
  %v470 = vpop.permute.xlu0 %469
  %471 = vrot.lane.b32.xlu0 %v205, 111
  %v472 = vpop.permute.xlu0 %471
  %473 = vrot.lane.b32.xlu0 %v206, 111
  %v474 = vpop.permute.xlu0 %473
  %475 = vrot.lane.b32.xlu0 %v207, 111
  %v476 = vpop.permute.xlu0 %475
  %vm477 = vcmp.lt.s32.totalorder %v225, 111
  %v478 = vsel %vm477, %v474, %v476
  %v479 = vsel %vm477, %v472, %v474
  %v480 = vsel %vm477, %v470, %v472
  %v481 = vsel %vm477, %v476, %v470
  %v482 = vlaneseq
  %v483 = vshrl.u32 %v482, 7
  %v484 = vsub.s32 0, %v483
  %v485 = vrot.slane %v212, %v484
  %v486 = vlaneseq
  %v487 = vshrl.u32 %v486, 7
  %v488 = vsub.s32 0, %v487
  %v489 = vrot.slane %v213, %v488
  %v490 = vlaneseq
  %v491 = vshrl.u32 %v490, 7
  %v492 = vsub.s32 0, %v491
  %v493 = vrot.slane %v214, %v492
  %v494 = vlaneseq
  %v495 = vshrl.u32 %v494, 7
  %v496 = vsub.s32 0, %v495
  %v497 = vrot.slane %v215, %v496
  %v498 = vmul.f32 %v480, %v485
  %v499 = vmul.f32 %v479, %v489
  %v500 = vmul.f32 %v478, %v493
  %v501 = vmul.f32 %v481, %v497
  %v502 = vld [vmem:[%s3] sm:$0xff]
  %v503 = vld [vmem:[%s4] sm:$0xff]
  %505 = vset.pattern.permute.xlu0 0
  %506 = vperm.xlu0 %505, %v503
  %v507 = vpop.permute.xlu0 %506
  %vm509 = vcmask 588800
  %v511 = vsel %vm509, %v502, 0
  %513 = vmatprep.subr.mxu0 0.0
  %514 = vmatpush1.msra.mxu0 0.0
  %515 = vmatprep.subr.mxu0 0.0
  %516 = vmatpush1.msra.mxu0 0.0
  %517 = vmatprep.subr.mxu0 0.0
  %518 = vmatpush1.msra.mxu0 0.0
  %519 = vmatprep.subr.mxu0 0.0
  %520 = vmatpush1.msra.mxu0 0.0
  %521 = vmatprep.subr.mxu0 0.0
  %522 = vmatpush1.msra.mxu0 0.0
  %523 = vmatprep.subr.mxu0 0.0
  %524 = vmatpush1.msra.mxu0 0.0
  %525 = vmatprep.subr.mxu0 0.0
  %526 = vmatpush1.msra.mxu0 0.0
  %527 = vmatprep.subr.mxu0 %v499
  %528 = vmatpush1.msra.mxu0 %v498
  %529 = vmatprep.subr.mxu0 %v466
  %530 = vmatpush1.msra.mxu0 %v465
  %531 = vmatprep.subr.mxu0 %v433
  %532 = vmatpush1.msra.mxu0 %v432
  %533 = vmatprep.subr.mxu0 %v400
  %534 = vmatpush1.msra.mxu0 %v399
  %535 = vmatprep.subr.mxu0 %v367
  %536 = vmatpush1.msra.mxu0 %v366
  %537 = vmatprep.subr.mxu0 %v347
  %538 = vmatpush1.msra.mxu0 %v346
  %539 = vmatprep.subr.mxu0 %v314
  %540 = vmatpush1.msra.mxu0 %v313
  %541 = vmatprep.subr.mxu0 %v281
  %542 = vmatpush1.msra.mxu0 %v280
  %543 = vmatprep.subr.mxu0 %v248
  %544 = vmatpush1.msra.mxu0 %v247
  %545 = vmatprep.subr.mxu0 0.0
  %546 = vmatpush2.msra.mxu0 0.0
  %547 = vmatprep.subr.mxu0 0.0
  %548 = vmatpush2.msra.mxu0 0.0
  %549 = vmatprep.subr.mxu0 0.0
  %550 = vmatpush2.msra.mxu0 0.0
  %551 = vmatprep.subr.mxu0 0.0
  %552 = vmatpush2.msra.mxu0 0.0
  %553 = vmatprep.subr.mxu0 0.0
  %554 = vmatpush2.msra.mxu0 0.0
  %555 = vmatprep.subr.mxu0 0.0
  %556 = vmatpush2.msra.mxu0 0.0
  %557 = vmatprep.subr.mxu0 0.0
  %558 = vmatpush2.msra.mxu0 0.0
  %559 = vmatprep.subr.mxu0 0.0
  %560 = vmatpush2.msra.mxu0 0.0
  %561 = vmatprep.subr.mxu0 0.0
  %562 = vmatpush2.msra.mxu0 0.0
  %563 = vmatprep.subr.mxu0 0.0
  %564 = vmatpush2.msra.mxu0 0.0
  %565 = vmatprep.subr.mxu0 0.0
  %566 = vmatpush2.msra.mxu0 0.0
  %567 = vmatprep.subr.mxu0 0.0
  %568 = vmatpush2.msra.mxu0 0.0
  %569 = vmatprep.subr.mxu0 0.0
  %570 = vmatpush2.msra.mxu0 0.0
  %571 = vmatprep.subr.mxu0 0.0
  %572 = vmatpush2.msra.mxu0 0.0
  %573 = vmatprep.subr.mxu0 0.0
  %574 = vmatpush2.msra.mxu0 0.0
  %575 = vmatprep.subr.mxu0 0.0
  %576 = vmatpush2.msra.mxu0 0.0
  %577 = vmatprep.mubr.f32.mxu0 0.0
  %578 = vmatmul.mubr.f32.gmra.mxu0 %v511
  %v579 = vpop.f32.mrf.mxu0
  %v580 = vadd.f32 %v507, %v579
  %v581 = vpop.f32.mrf.mxu0
  %v582 = vadd.f32 %v507, %v581
  %583 = vdwg.mxu0
  %584 = vmatprep.subr.mxu0 0.0
  %585 = vmatpush1.msra.mxu0 0.0
  %586 = vmatprep.subr.mxu0 0.0
  %587 = vmatpush1.msra.mxu0 0.0
  %588 = vmatprep.subr.mxu0 0.0
  %589 = vmatpush1.msra.mxu0 0.0
  %590 = vmatprep.subr.mxu0 0.0
  %591 = vmatpush1.msra.mxu0 0.0
  %592 = vmatprep.subr.mxu0 0.0
  %593 = vmatpush1.msra.mxu0 0.0
  %594 = vmatprep.subr.mxu0 0.0
  %595 = vmatpush1.msra.mxu0 0.0
  %596 = vmatprep.subr.mxu0 0.0
  %597 = vmatpush1.msra.mxu0 0.0
  %598 = vmatprep.subr.mxu0 %v501
  %599 = vmatpush1.msra.mxu0 %v500
  %600 = vmatprep.subr.mxu0 %v468
  %601 = vmatpush1.msra.mxu0 %v467
  %602 = vmatprep.subr.mxu0 %v435
  %603 = vmatpush1.msra.mxu0 %v434
  %604 = vmatprep.subr.mxu0 %v402
  %605 = vmatpush1.msra.mxu0 %v401
  %606 = vmatprep.subr.mxu0 %v369
  %607 = vmatpush1.msra.mxu0 %v368
  %608 = vmatprep.subr.mxu0 %v349
  %609 = vmatpush1.msra.mxu0 %v348
  %610 = vmatprep.subr.mxu0 %v316
  %611 = vmatpush1.msra.mxu0 %v315
  %612 = vmatprep.subr.mxu0 %v283
  %613 = vmatpush1.msra.mxu0 %v282
  %614 = vmatprep.subr.mxu0 %v250
  %615 = vmatpush1.msra.mxu0 %v249
  %616 = vmatprep.subr.mxu0 0.0
  %617 = vmatpush2.msra.mxu0 0.0
  %618 = vmatprep.subr.mxu0 0.0
  %619 = vmatpush2.msra.mxu0 0.0
  %620 = vmatprep.subr.mxu0 0.0
  %621 = vmatpush2.msra.mxu0 0.0
  %622 = vmatprep.subr.mxu0 0.0
  %623 = vmatpush2.msra.mxu0 0.0
  %624 = vmatprep.subr.mxu0 0.0
  %625 = vmatpush2.msra.mxu0 0.0
  %626 = vmatprep.subr.mxu0 0.0
  %627 = vmatpush2.msra.mxu0 0.0
  %628 = vmatprep.subr.mxu0 0.0
  %629 = vmatpush2.msra.mxu0 0.0
  %630 = vmatprep.subr.mxu0 0.0
  %631 = vmatpush2.msra.mxu0 0.0
  %632 = vmatprep.subr.mxu0 0.0
  %633 = vmatpush2.msra.mxu0 0.0
  %634 = vmatprep.subr.mxu0 0.0
  %635 = vmatpush2.msra.mxu0 0.0
  %636 = vmatprep.subr.mxu0 0.0
  %637 = vmatpush2.msra.mxu0 0.0
  %638 = vmatprep.subr.mxu0 0.0
  %639 = vmatpush2.msra.mxu0 0.0
  %640 = vmatprep.subr.mxu0 0.0
  %641 = vmatpush2.msra.mxu0 0.0
  %642 = vmatprep.subr.mxu0 0.0
  %643 = vmatpush2.msra.mxu0 0.0
  %644 = vmatprep.subr.mxu0 0.0
  %645 = vmatpush2.msra.mxu0 0.0
  %646 = vmatprep.subr.mxu0 0.0
  %647 = vmatpush2.msra.mxu0 0.0
  %648 = vmatprep.mubr.f32.mxu0 0.0
  %649 = vmatmul.mubr.f32.gmra.mxu0 %v511
  %v650 = vpop.f32.mrf.mxu0
  %v651 = vadd.f32 %v507, %v650
  %v652 = vpop.f32.mrf.mxu0
  %v653 = vadd.f32 %v507, %v652
  %654 = vdwg.mxu0
  %v655 = vxor.u32 %v580, 2147483648
  %v656 = vxor.u32 %v582, 2147483648
  %v657 = vxor.u32 %v651, 2147483648
  %v658 = vxor.u32 %v653, 2147483648
  %v659 = vmul.f32 %v655, 1.442695
  %v660 = vpow.pop %v659
  %v661 = vmul.f32 %v656, 1.442695
  %v662 = vpow.pop %v661
  %v663 = vmul.f32 %v657, 1.442695
  %v664 = vpow.pop %v663
  %v665 = vmul.f32 %v658, 1.442695
  %v666 = vpow.pop %v665
  %v667 = vadd.f32 %v660, 1.0
  %v668 = vadd.f32 %v662, 1.0
  %v669 = vadd.f32 %v664, 1.0
  %v670 = vadd.f32 %v666, 1.0
  %v671 = vrcp.pop %v667
  %v672 = vmul.f32 1.0, %v671
  %v673 = vrcp.pop %v668
  %v674 = vmul.f32 1.0, %v673
  %v675 = vrcp.pop %v669
  %v676 = vmul.f32 1.0, %v675
  %v677 = vrcp.pop %v670
  %v678 = vmul.f32 1.0, %v677
  %v679 = vmul.f32 %v580, %v672
  %v680 = vmul.f32 %v582, %v674
  %v681 = vmul.f32 %v651, %v676
  %v682 = vmul.f32 %v653, %v678
  %v683 = vadd.f32 %v679, %v23
  %v684 = vadd.f32 %v680, %v24
  %v685 = vadd.f32 %v681, %v25
  %v686 = vadd.f32 %v682, %v26
  %687 = vst [vmem:[%s6] sm:$0xff] %v683
  %688 = vst [vmem:[%s6 + $0x8] sm:$0xff] %v684
  %689 = vst [vmem:[%s6 + $0x10] sm:$0xff] %v685
  %690 = vst [vmem:[%s6 + $0x18] sm:$0xff] %v686
  // Predicated region
  $region26: #{_bottleneck_forward.1} parent=0 // pred_check
    _
  $region27: #{_bottleneck_forward.1} parent=0 // pred_check_branch
    %692 = sbr.rel (0) target = $region29
  $region28: #{_bottleneck_forward.1} parent=0 // pred_region
    _
  $region29: #{_bottleneck_forward.1} parent=0 // pred_fallthru
    _
  // Predicated region
  $region30: #{_bottleneck_forward.1} parent=0 // pred_check
    _
  $region31: #{_bottleneck_forward.1} parent=0 // pred_check_branch
    %694 = sbr.rel (0) target = $region33
  $region32: #{_bottleneck_forward.1} parent=0 // pred_region
    _
  $region33: #{_bottleneck_forward.1} parent=0 // pred_fallthru
    _

</llo_original>
